<compile_context>
chip_gen: v7x
topology: tpu7x:2x2x1
jax: 0.10.0
libtpu: 0.0.40
codegen_flags: <defaults>
</compile_context>

<pallas_src>
import numpy as np
import jax
import jax.numpy as jnp
from jax.experimental import pallas as pl
from jax.experimental.pallas import tpu as pltpu

EMBED = 32                       # embed_size
EDGE_ATTR_DIM = 4                # synthetic edge-attr dim (LazyLinear adapts in torch)
Z_PAD = 128                      # padded edge-MLP contraction dim (3*EMBED + pad)
EDGE_ATTR_PAD = Z_PAD - 3 * EMBED
D_MODEL = 2 * EMBED              # transformer d_model = 2 * embed_size
DFF = 2 * EMBED                  # dim_feedforward = 2 * embed_size
LAYER_NUM = 3
NEG_INF = -1e30
LN_EPS = 1e-5
PR_LANES = 128                   # lane-dense priority output width


# ---------------------------------------------------------------------------
# Pallas kernels
# ---------------------------------------------------------------------------

def _mpnn_edge_mlp_kernel(z_ref, w1_ref, b1_ref, w2_ref, b2_ref, o_ref):
    # per-edge MLP: relu(z @ W1 + b1) @ W2 + b2   (bf16 MXU operands, f32 accum)
    z = z_ref[...].astype(jnp.bfloat16)
    h = jnp.dot(z, w1_ref[...].astype(jnp.bfloat16),
                preferred_element_type=jnp.float32) + b1_ref[...]
    h = jnp.maximum(h, 0.0)
    o_ref[...] = jnp.dot(h.astype(jnp.bfloat16), w2_ref[...].astype(jnp.bfloat16),
                         preferred_element_type=jnp.float32) + b2_ref[...]


def mpnn_edge_mlp(z, w1, b1, w2, b2, tile=256):
    ne, zd = z.shape
    hdim = w1.shape[1]
    e = w2.shape[1]
    # adaptive tile: big (256) to amortize per-step overhead, but not larger
    # than the (8-rounded) edge count for tiny graphs.
    ne8 = ((ne + 7) // 8) * 8
    tile = min(tile, ne8)
    ne_pad = ((ne + tile - 1) // tile) * tile
    z_pad = z if ne_pad == ne else jnp.pad(z, ((0, ne_pad - ne), (0, 0)))
    out = pl.pallas_call(
        _mpnn_edge_mlp_kernel,
        out_shape=jax.ShapeDtypeStruct((ne_pad, e), jnp.float32),
        grid=(ne_pad // tile,),
        in_specs=[
            pl.BlockSpec((tile, zd), lambda i: (i, 0)),
            pl.BlockSpec((zd, hdim), lambda i: (0, 0)),
            pl.BlockSpec((1, hdim), lambda i: (0, 0)),
            pl.BlockSpec((hdim, e), lambda i: (0, 0)),
            pl.BlockSpec((1, e), lambda i: (0, 0)),
        ],
        out_specs=pl.BlockSpec((tile, e), lambda i: (i, 0)),
        compiler_params=pltpu.CompilerParams(dimension_semantics=("parallel",)),
    )(z_pad, w1, b1, w2, b2)
    return out[:ne]


def _fused_encoder_priority_kernel(
        x_ref, mask_ref,
        wqkv_ref, bqkv_ref, wo_ref, bo_ref,
        ln1w_ref, ln1b_ref, w1_ref, b1_ref, w2_ref, b2_ref,
        ln2w_ref, ln2b_ref,
        pw1_ref, pb1_ref, pw2_ref, pb2_ref,
        pr_ref):
    # All 3 post-norm TransformerEncoderLayers (nhead=1, dropout=0) + priority
    # head for ONE batch row; layers unrolled, weights stay VMEM-resident.
    x = x_ref[...]                    # (S, D) f32 (batch dim squeezed)
    mask_add = mask_ref[...]          # (1, S) additive key-padding mask
    d = x.shape[-1]
    scale = 1.0 / float(d) ** 0.5

    def bf(v):
        return v.astype(jnp.bfloat16)

    def layer_norm(y, w, b):
        mu = jnp.mean(y, axis=-1, keepdims=True)
        var = jnp.mean((y - mu) ** 2, axis=-1, keepdims=True)
        return (y - mu) * jax.lax.rsqrt(var + LN_EPS) * w + b

    for l in range(LAYER_NUM):        # static unroll over layers
        qkv = jnp.dot(bf(x), bf(wqkv_ref[l]),
                      preferred_element_type=jnp.float32) + bqkv_ref[l]
        q = qkv[:, :d]
        k = qkv[:, d:2 * d]
        v = qkv[:, 2 * d:]

        scores = jax.lax.dot_general(bf(q), bf(k), (((1,), (1,)), ((), ())),
                                     preferred_element_type=jnp.float32) * scale
        scores = scores + mask_add                     # broadcast over query rows
        scores = scores - jnp.max(scores, axis=-1, keepdims=True)
        p = jnp.exp(scores)
        inv = pl.reciprocal(jnp.sum(p, axis=-1, keepdims=True), approx=True)
        p = p * inv
        a = jnp.dot(bf(p), bf(v), preferred_element_type=jnp.float32)
        a = jnp.dot(bf(a), bf(wo_ref[l]),
                    preferred_element_type=jnp.float32) + bo_ref[l]

        x = layer_norm(x + a, ln1w_ref[l], ln1b_ref[l])
        f = jnp.dot(bf(x), bf(w1_ref[l]),
                    preferred_element_type=jnp.float32) + b1_ref[l]
        f = jnp.maximum(f, 0.0)
        f = jnp.dot(bf(f), bf(w2_ref[l]),
                    preferred_element_type=jnp.float32) + b2_ref[l]
        x = layer_norm(x + f, ln2w_ref[l], ln2b_ref[l])

    # priority head on the global token (row 0), fused to avoid a 2nd launch
    cls = x[0:1, :]                                    # (1, D)
    h = jnp.dot(bf(cls), bf(pw1_ref[...]),
                preferred_element_type=jnp.float32) + pb1_ref[...]
    h = jnp.maximum(h, 0.0)
    pr = jnp.dot(bf(h), bf(pw2_ref[...]),
                 preferred_element_type=jnp.float32) + pb2_ref[...]   # (1, 1)
    pr_ref[...] = jnp.broadcast_to(pr, pr_ref.shape)   # lane-dense (1, 128) store


def fused_encoder_priority(x, mask_add, ap, pr_params):
    b, s, d = x.shape
    L = ap['wqkv'].shape[0]
    dff = ap['w1'].shape[2]
    pw1, pb1, pw2, pb2 = pr_params
    hid = pw1.shape[1]
    full = lambda shp: pl.BlockSpec(shp, lambda i, _shp=shp: (0,) * len(_shp))
    out = pl.pallas_call(
        _fused_encoder_priority_kernel,
        out_shape=jax.ShapeDtypeStruct((b, 1, PR_LANES), jnp.float32),
        grid=(b,),
        in_specs=[
            pl.BlockSpec((None, s, d), lambda i: (i, 0, 0)),
            pl.BlockSpec((None, 1, s), lambda i: (i, 0, 0)),
            full((L, d, 3 * d)), full((L, 1, 3 * d)),
            full((L, d, d)), full((L, 1, d)),
            full((L, 1, d)), full((L, 1, d)),
            full((L, d, dff)), full((L, 1, dff)),
            full((L, dff, d)), full((L, 1, d)),
            full((L, 1, d)), full((L, 1, d)),
            full((d, hid)), full((1, hid)),
            full((hid, 1)), full((1, 1)),
        ],
        out_specs=pl.BlockSpec((None, 1, PR_LANES), lambda i: (i, 0, 0)),
        compiler_params=pltpu.CompilerParams(dimension_semantics=("parallel",)),
    )(x, mask_add, ap['wqkv'], ap['bqkv'], ap['wo'], ap['bo'],
      ap['ln1w'], ap['ln1b'], ap['w1'], ap['b1'], ap['w2'], ap['b2'],
      ap['ln2w'], ap['ln2b'], pw1, pb1, pw2, pb2)
    return out[:, 0, 0]                                # (B,)


# ---------------------------------------------------------------------------
# Model glue (plain JAX): gather/scatter, aggregation, sequence packing
# ---------------------------------------------------------------------------

def simple_mpnn(x, edge_index, edge_attr, params):
    """SimpleMPNN forward: max-aggregated edge MLP + residual."""
    src, dst = edge_index[0], edge_index[1]          # x_j = x[src], x_i = x[dst]
    x_j = x[src]
    x_i = x[dst]
    # edge_attr is already zero-padded to EDGE_ATTR_PAD cols -> z is exactly 128 wide
    z = jnp.concatenate([x_j - x_i, x_j, x_i, edge_attr], axis=-1)
    msgs = mpnn_edge_mlp(z, *params)                  # Pallas hot path
    agg = jax.ops.segment_max(msgs, dst, num_segments=x.shape[0])
    agg = jnp.where(jnp.isfinite(agg), agg, 0.0)      # PyG 'max' aggr: empty target -> 0
    return x + agg                                    # residual (dims match -> no except path)


def spatial_temporal_gnn_forward(params, data):
    # --- g_node message passing ---
    gx = data['g_x']
    for lp in params['g_layers']:
        gx = simple_mpnn(gx, data['g2g_index'], data['g2g_attr'], lp)

    # --- temporal encoding: inject g features into p nodes (g_to_p) ---
    # NOTE: last-writer-wins like the torch indexed assignment; destinations are
    # unique in this data (use .add if duplicates are ever possible).
    g2p = data['g2p_index']
    px = data['p_x']
    px = px.at[g2p[1]].set(px[g2p[1]] + gx[g2p[0]])

    # --- agent identifier branch ---
    for lp in params['p_layers']:
        px = simple_mpnn(px, data['p2p_index'], data['p2p_attr'], lp)
    batch_agent_id = data['ps_ptr'][data['p_batch']] + data['p_path0']
    gf = jax.ops.segment_max(px, batch_agent_id, num_segments=data['num_agents'])
    gf = jnp.where(jnp.isfinite(gf), gf, 0.0)         # scatter_max fill behaviour
    px = jnp.concatenate([px, gf[batch_agent_id]], axis=-1)   # (Np, 2E)

    # --- pack into padded attention tensor (B, S, 2E) + key padding mask ---
    batch_num = data['batch_num']
    seq_len = data['seq_len']
    local_idx = jnp.arange(px.shape[0]) - data['p_ptr'][data['p_batch']]
    attn = jnp.zeros((batch_num, seq_len, D_MODEL), jnp.float32)
    attn = attn.at[data['p_batch'], 1 + local_idx, :].set(px)
    attn = attn.at[:, 0, :].set(params['global_token'][None, :])
    pad = jnp.ones((batch_num, seq_len), jnp.float32)
    pad = pad.at[:, 0].set(0.0)
    pad = pad.at[data['p_batch'], 1 + local_idx].set(0.0)
    mask_add = (pad * NEG_INF)[:, None, :]            # (B, 1, S) additive mask

    # --- fused 3-layer transformer encoder + priority head (single Pallas call) ---
    return fused_encoder_priority(attn, mask_add, params['attn'], params['priority'])


# ---------------------------------------------------------------------------
# Deterministic parameter init
# ---------------------------------------------------------------------------

def _linear(key, fan_in, fan_out):
    k1, k2 = jax.random.split(key)
    bound = 1.0 / np.sqrt(fan_in)
    w = jax.random.uniform(k1, (fan_in, fan_out), jnp.float32, -bound, bound)
    b = jax.random.uniform(k2, (1, fan_out), jnp.float32, -bound, bound)
    return w, b


def init_params(key):
    keys = jax.random.split(key, 64)
    ki = iter(keys)
    z_in = 3 * EMBED + EDGE_ATTR_DIM        # what torch LazyLinear would see (100)

    def mpnn_params():
        w1, b1 = _linear(next(ki), z_in, EMBED)
        # zero-pad W1 rows to the padded contraction dim (matches zero-padded z cols)
        w1 = jnp.pad(w1, ((0, Z_PAD - z_in), (0, 0)))
        w2, b2 = _linear(next(ki), EMBED, EMBED)
        return (w1, b1, w2, b2)

    def attn_layer_params():
        wqkv, bqkv = _linear(next(ki), D_MODEL, 3 * D_MODEL)
        wo, bo = _linear(next(ki), D_MODEL, D_MODEL)
        w1, b1 = _linear(next(ki), D_MODEL, DFF)
        w2, b2 = _linear(next(ki), DFF, D_MODEL)
        ones = jnp.ones((1, D_MODEL), jnp.float32)
        zeros = jnp.zeros((1, D_MODEL), jnp.float32)
        return dict(wqkv=wqkv, bqkv=bqkv, wo=wo, bo=bo,
                    ln1w=ones, ln1b=zeros, w1=w1, b1=b1, w2=w2, b2=b2,
                    ln2w=ones, ln2b=zeros)

    attn_layers = [attn_layer_params() for _ in range(LAYER_NUM)]
    attn_stacked = {k: jnp.stack([lyr[k] for lyr in attn_layers])
                    for k in attn_layers[0]}          # each (L, ...)

    pw1, pb1 = _linear(next(ki), D_MODEL, EMBED)
    pw2, pb2 = _linear(next(ki), EMBED, 1)
    return dict(
        g_layers=[mpnn_params() for _ in range(LAYER_NUM)],
        p_layers=[mpnn_params() for _ in range(LAYER_NUM)],
        attn=attn_stacked,
        global_token=jnp.zeros((D_MODEL,), jnp.float32),   # nn.Parameter(zeros)
        priority=(pw1, pb1, pw2, pb2),
    )


# ---------------------------------------------------------------------------
# Synthetic HeteroData-like graph construction
# ---------------------------------------------------------------------------

def _ring_edges(num_nodes, offset):
    src, dst = [], []
    for i in range(num_nodes):
        j = (i + 1) % num_nodes
        src += [offset + i, offset + j]
        dst += [offset + j, offset + i]
    return src, dst


def _pad_attr(attr):
    # pad edge attrs ONCE so the edge-MLP contraction dim is exactly Z_PAD (=128)
    return jnp.pad(attr, ((0, 0), (0, EDGE_ATTR_PAD - EDGE_ATTR_DIM)))


def make_data(key):
    ks = jax.random.split(key, 8)

    # g nodes: 6 per graph, 2 graphs
    ng_per, batch_num = 6, 2
    ng = ng_per * batch_num
    g_x = jax.random.normal(ks[0], (ng, EMBED), jnp.float32)
    s0, d0 = _ring_edges(ng_per, 0)
    s1, d1 = _ring_edges(ng_per, ng_per)
    g2g_index = np.array([s0 + s1, d0 + d1], dtype=np.int32)
    g2g_attr = jax.random.normal(ks[1], (g2g_index.shape[1], EDGE_ATTR_DIM), jnp.float32)

    # p nodes: 8 in graph 0, 5 in graph 1 (exercises the padding mask)
    p_counts = [8, 5]
    np_total = sum(p_counts)
    p_batch = np.array([0] * 8 + [1] * 5, dtype=np.int32)
    p_ptr = np.array([0, 8, 13], dtype=np.int32)
    p_x = jax.random.normal(ks[2], (np_total, EMBED), jnp.float32)

    ps0, pd0 = _ring_edges(8, 0)
    ps1, pd1 = _ring_edges(5, 8)
    p2p_index = np.array([ps0 + ps1, pd0 + pd1], dtype=np.int32)
    p2p_attr = jax.random.normal(ks[3], (p2p_index.shape[1], EDGE_ATTR_DIM), jnp.float32)

    # g_to_p: each p node receives from exactly one g node of its graph
    local = np.arange(np_total) - p_ptr[p_batch]
    g2p_src = (local % ng_per) + ng_per * p_batch
    g2p_index = np.stack([g2p_src, np.arange(np_total)]).astype(np.int32)

    # agents: 2 per graph -> problem_setting.ptr = [0,2,4], 4 agents total
    p_path0 = np.array([0, 0, 0, 0, 1, 1, 1, 1, 0, 0, 0, 1, 1], dtype=np.int32)
    ps_ptr = np.array([0, 2, 4], dtype=np.int32)
    num_agents = 4

    seq_len = int(local.max() + 2)   # matches idxs[1].max() + 2 in the torch code

    return dict(
        g_x=g_x, g2g_index=jnp.array(g2g_index), g2g_attr=_pad_attr(g2g_attr),
        p_x=p_x, p2p_index=jnp.array(p2p_index), p2p_attr=_pad_attr(p2p_attr),
        g2p_index=jnp.array(g2p_index),
        p_batch=jnp.array(p_batch), p_ptr=jnp.array(p_ptr),
        p_path0=jnp.array(p_path0), ps_ptr=jnp.array(ps_ptr),
        num_agents=num_agents, batch_num=batch_num, seq_len=seq_len,
    )


if __name__ == "__main__":
    key = jax.random.PRNGKey(0)
    kp, kd = jax.random.split(key)
    params = init_params(kp)
    data = make_data(kd)

    out = spatial_temporal_gnn_forward(params, data)
    out = jax.block_until_ready(out)

    assert out.shape == (data['batch_num'],), out.shape
    assert bool(jnp.all(jnp.isfinite(out)))
    print("KERNEL_OK")
</pallas_src>

<mosaic_0001>
module attributes {stable_mosaic.version = 11 : i64} {
  func.func @_mpnn_edge_mlp_kernel(%arg0: i32, %arg1: memref<24x128xf32, #tpu.memory_space<vmem>>, %arg2: memref<128x32xf32, #tpu.memory_space<vmem>>, %arg3: memref<1x32xf32, #tpu.memory_space<vmem>>, %arg4: memref<32x32xf32, #tpu.memory_space<vmem>>, %arg5: memref<1x32xf32, #tpu.memory_space<vmem>>, %arg6: memref<24x32xf32, #tpu.memory_space<vmem>>) attributes {dimension_semantics = [#tpu.dimension_semantics<parallel>], iteration_bounds = array<i64: 1>, scalar_prefetch = 0 : i64, scratch_operands = 0 : i64, tpu.core_type = #tpu.core_type<tc>, window_params = [{transform_indices = @transform_0, window_bounds = array<i64: 24, 128>}, {pipeline_mode = #tpu.pipeline_mode<synchronous>, transform_indices = @transform_1, window_bounds = array<i64: 128, 32>}, {pipeline_mode = #tpu.pipeline_mode<synchronous>, transform_indices = @transform_2, window_bounds = array<i64: 1, 32>}, {pipeline_mode = #tpu.pipeline_mode<synchronous>, transform_indices = @transform_3, window_bounds = array<i64: 32, 32>}, {pipeline_mode = #tpu.pipeline_mode<synchronous>, transform_indices = @transform_4, window_bounds = array<i64: 1, 32>}, {transform_indices = @transform_5, window_bounds = array<i64: 24, 32>}]} {
    %c0 = arith.constant 0 : index
    %c0_0 = arith.constant 0 : index
    %0 = vector.load %arg1[%c0, %c0_0] : memref<24x128xf32, #tpu.memory_space<vmem>>, vector<24x128xf32>
    %1 = arith.truncf %0 : vector<24x128xf32> to vector<24x128xbf16>
    %c0_1 = arith.constant 0 : index
    %c0_2 = arith.constant 0 : index
    %2 = vector.load %arg2[%c0_1, %c0_2] : memref<128x32xf32, #tpu.memory_space<vmem>>, vector<128x32xf32>
    %3 = arith.truncf %2 : vector<128x32xf32> to vector<128x32xbf16>
    %cst = arith.constant dense<0.000000e+00> : vector<24x32xf32>
    %4 = tpu.matmul %1, %3, %cst {dimension_numbers = #tpu.dot_dimension_numbers<[1], [0], [0], [1], [0, 0, 1, 1], [], []>} : vector<24x128xbf16>, vector<128x32xbf16>, vector<24x32xf32> -> vector<24x32xf32>
    %c0_3 = arith.constant 0 : index
    %c0_4 = arith.constant 0 : index
    %5 = vector.load %arg3[%c0_3, %c0_4] : memref<1x32xf32, #tpu.memory_space<vmem>>, vector<1x32xf32>
    %6 = vector.broadcast %5 : vector<1x32xf32> to vector<24x32xf32>
    %7 = arith.addf %4, %6 : vector<24x32xf32>
    %cst_5 = arith.constant 0.000000e+00 : f32
    %8 = vector.broadcast %cst_5 : f32 to vector<24x32xf32>
    %9 = arith.maximumf %7, %8 : vector<24x32xf32>
    %10 = arith.truncf %9 : vector<24x32xf32> to vector<24x32xbf16>
    %c0_6 = arith.constant 0 : index
    %c0_7 = arith.constant 0 : index
    %11 = vector.load %arg4[%c0_6, %c0_7] : memref<32x32xf32, #tpu.memory_space<vmem>>, vector<32x32xf32>
    %12 = arith.truncf %11 : vector<32x32xf32> to vector<32x32xbf16>
    %cst_8 = arith.constant dense<0.000000e+00> : vector<24x32xf32>
    %13 = tpu.matmul %10, %12, %cst_8 {dimension_numbers = #tpu.dot_dimension_numbers<[1], [0], [0], [1], [0, 0, 1, 1], [], []>} : vector<24x32xbf16>, vector<32x32xbf16>, vector<24x32xf32> -> vector<24x32xf32>
    %c0_9 = arith.constant 0 : index
    %c0_10 = arith.constant 0 : index
    %14 = vector.load %arg5[%c0_9, %c0_10] : memref<1x32xf32, #tpu.memory_space<vmem>>, vector<1x32xf32>
    %15 = vector.broadcast %14 : vector<1x32xf32> to vector<24x32xf32>
    %16 = arith.addf %13, %15 : vector<24x32xf32>
    %c0_11 = arith.constant 0 : index
    %c0_12 = arith.constant 0 : index
    %17 = vector.load %arg6[%c0_11, %c0_12] : memref<24x32xf32, #tpu.memory_space<vmem>>, vector<24x32xf32>
    tpu.vector_store %arg6[%c0_11, %c0_12], %16 {strides = array<i32>} : memref<24x32xf32, #tpu.memory_space<vmem>>, vector<24x32xf32>,
    return
  }
  func.func @transform_0(%arg0: i32) -> (i32, i32) {
    %c0_i32 = arith.constant 0 : i32
    %c0_i32_0 = arith.constant 0 : i32
    return %arg0, %c0_i32 : i32, i32
  }
  func.func @transform_1(%arg0: i32) -> (i32, i32) {
    %c0_i32 = arith.constant 0 : i32
    %c0_i32_0 = arith.constant 0 : i32
    %c0_i32_1 = arith.constant 0 : i32
    return %c0_i32, %c0_i32_0 : i32, i32
  }
  func.func @transform_2(%arg0: i32) -> (i32, i32) {
    %c0_i32 = arith.constant 0 : i32
    %c0_i32_0 = arith.constant 0 : i32
    %c0_i32_1 = arith.constant 0 : i32
    return %c0_i32, %c0_i32_0 : i32, i32
  }
  func.func @transform_3(%arg0: i32) -> (i32, i32) {
    %c0_i32 = arith.constant 0 : i32
    %c0_i32_0 = arith.constant 0 : i32
    %c0_i32_1 = arith.constant 0 : i32
    return %c0_i32, %c0_i32_0 : i32, i32
  }
  func.func @transform_4(%arg0: i32) -> (i32, i32) {
    %c0_i32 = arith.constant 0 : i32
    %c0_i32_0 = arith.constant 0 : i32
    %c0_i32_1 = arith.constant 0 : i32
    return %c0_i32, %c0_i32_0 : i32, i32
  }
  func.func @transform_5(%arg0: i32) -> (i32, i32) {
    %c0_i32 = arith.constant 0 : i32
    %c0_i32_0 = arith.constant 0 : i32
    return %arg0, %c0_i32 : i32, i32
  }
}

</mosaic_0001>

<llo_original>
// kernel: tpu_custom_call.1
$region0: #{tpu_custom_call.1}
  #allocation0 [shape = 'u32[]', space=smem, size = 0x4, offset = 0x4, fixed_abs, tag = 'smem constant byte address 0x4 - core index']
  #allocation1 [shape = 'u32[144,128]{1,0:T(1,128)}', space=vmem, size = 0x12000, scoped, tag = 'internal scratch']
  %s0 = inlined_call_operand.vmem [shape: f32[24,128], index: 0, kind: input, shape index: {}]
  %s1 = inlined_call_operand.vmem [shape: f32[128,32], index: 1, kind: input, shape index: {}]
  %s2 = inlined_call_operand.vmem [shape: f32[1,32], index: 2, kind: input, shape index: {}]
  %s3 = inlined_call_operand.vmem [shape: f32[32,32], index: 3, kind: input, shape index: {}]
  %s4 = inlined_call_operand.vmem [shape: f32[1,32], index: 4, kind: input, shape index: {}]
  %s5 = inlined_call_operand.hbm [shape: f32[24,32], index: 5, kind: output, shape index: {}]
  %s6 = sld [smem:[#allocation0]]
  $region30: #{tpu_custom_call.1} parent=0
    _
  %s8 = ssub.s32 1, %s6
  %s9 = scalar_select 0, %s8, %s6
  $region1: #{tpu_custom_call.1} parent=0
    #allocation2 [shape = 'u8[12288]{0}', space=vmem, size = 0x3000, scoped, tag = 'output window, operand 0, single buffered']
    #allocation3 [shape = 's32[1]{0}', space=sflag, size = 0x4, scoped, tag = 'scoped memory for tpu_custom_call.1']
    %10 = vsyncpa [#allocation3], 0
    // Predicated region
    $region2: #{tpu_custom_call.1} parent=1 // pred_check
      _
    $region3: #{tpu_custom_call.1} parent=1 // pred_check_branch
      %12 = sbr.rel (0) target = $region5
    $region4: #{tpu_custom_call.1} parent=1 // pred_region
      _
    $region5: #{tpu_custom_call.1} parent=1 // pred_fallthru
      _
    // Predicated region
    $region6: #{tpu_custom_call.1} parent=1 // pred_check
      _
    $region7: #{tpu_custom_call.1} parent=1 // pred_check_branch
      %14 = sbr.rel (0) target = $region9
    $region8: #{tpu_custom_call.1} parent=1 // pred_region
      _
    $region9: #{tpu_custom_call.1} parent=1 // pred_fallthru
      _
    // Predicated region
    $region10: #{tpu_custom_call.1} parent=1 // pred_check
      _
    $region11: #{tpu_custom_call.1} parent=1 // pred_check_branch
      %16 = sbr.rel (0) target = $region13
    $region12: #{tpu_custom_call.1} parent=1 // pred_region
      _
    $region13: #{tpu_custom_call.1} parent=1 // pred_fallthru
      _
    // Predicated region
    $region14: #{tpu_custom_call.1} parent=1 // pred_check
      _
    $region15: #{tpu_custom_call.1} parent=1 // pred_check_branch
      %18 = sbr.rel (0) target = $region17
    $region16: #{tpu_custom_call.1} parent=1 // pred_region
      _
    $region17: #{tpu_custom_call.1} parent=1 // pred_fallthru
      _
    // Predicated region
    $region18: #{tpu_custom_call.1} parent=1 // pred_check
      _
    $region19: #{tpu_custom_call.1} parent=1 // pred_check_branch
      %20 = sbr.rel (0) target = $region21
    $region20: #{tpu_custom_call.1} parent=1 // pred_region
      _
    $region21: #{tpu_custom_call.1} parent=1 // pred_fallthru
      _
    %v22 = vld [vmem:[%s0] sm:$0xff]
    %v23 = vld [vmem:[%s0 + $0x8] sm:$0xff]
    %v24 = vld [vmem:[%s0 + $0x10] sm:$0xff]
    %v25 = vpack.c.bf16 %v23, %v22
    %v26 = vpack.c.bf16 %v24, %v24
    %v27 = vld [vmem:[%s1] sm:$0xff]
    %v28 = vld [vmem:[%s1 + $0x8] sm:$0xff]
    %v29 = vld [vmem:[%s1 + $0x10] sm:$0xff]
    %v30 = vld [vmem:[%s1 + $0x18] sm:$0xff]
    %v31 = vld [vmem:[%s1 + $0x20] sm:$0xff]
    %v32 = vld [vmem:[%s1 + $0x28] sm:$0xff]
    %v33 = vld [vmem:[%s1 + $0x30] sm:$0xff]
    %v34 = vld [vmem:[%s1 + $0x38] sm:$0xff]
    %v35 = vld [vmem:[%s1 + $0x40] sm:$0xff]
    %v36 = vld [vmem:[%s1 + $0x48] sm:$0xff]
    %v37 = vld [vmem:[%s1 + $0x50] sm:$0xff]
    %v38 = vld [vmem:[%s1 + $0x58] sm:$0xff]
    %v39 = vld [vmem:[%s1 + $0x60] sm:$0xff]
    %v40 = vld [vmem:[%s1 + $0x68] sm:$0xff]
    %v41 = vld [vmem:[%s1 + $0x70] sm:$0xff]
    %v42 = vld [vmem:[%s1 + $0x78] sm:$0xff]
    %v43 = vpack.c.bf16 %v28, %v27
    %v44 = vpack.c.bf16 %v30, %v29
    %v45 = vpack.c.bf16 %v32, %v31
    %v46 = vpack.c.bf16 %v34, %v33
    %v47 = vpack.c.bf16 %v36, %v35
    %v48 = vpack.c.bf16 %v38, %v37
    %v49 = vpack.c.bf16 %v40, %v39
    %v50 = vpack.c.bf16 %v42, %v41
    %v51 = vld [vmem:[%s2] sm:$0x1]
    %v53 = vlaneseq
    %v54 = vshrl.u32 %v53, 7
    %v55 = vsub.s32 0, %v54
    %v56 = vrot.slane %v51, %v55
    %58 = vmatprep.subr.bf16.mxu0 0
    %59 = vmatpush1.bf16.msra.mxu0 %v43
    %60 = vmatprep.subr.bf16.mxu0 0
    %61 = vmatpush1.bf16.msra.mxu0 %v44
    %62 = vmatprep.subr.bf16.mxu0 0
    %63 = vmatpush1.bf16.msra.mxu0 %v45
    %64 = vmatprep.subr.bf16.mxu0 0
    %65 = vmatpush1.bf16.msra.mxu0 %v46
    %66 = vmatprep.subr.bf16.mxu0 0
    %67 = vmatpush1.bf16.msra.mxu0 %v47
    %68 = vmatprep.subr.bf16.mxu0 0
    %69 = vmatpush1.bf16.msra.mxu0 %v48
    %70 = vmatprep.subr.bf16.mxu0 0
    %71 = vmatpush1.bf16.msra.mxu0 %v49
    %72 = vmatprep.subr.bf16.mxu0 0
    %73 = vmatpush1.bf16.msra.mxu0 %v50
    %74 = vmatprep.subr.bf16.mxu0 0
    %75 = vmatpush1.bf16.msra.mxu0 0
    %76 = vmatprep.subr.bf16.mxu0 0
    %77 = vmatpush1.bf16.msra.mxu0 0
    %78 = vmatprep.subr.bf16.mxu0 0
    %79 = vmatpush1.bf16.msra.mxu0 0
    %80 = vmatprep.subr.bf16.mxu0 0
    %81 = vmatpush1.bf16.msra.mxu0 0
    %82 = vmatprep.subr.bf16.mxu0 0
    %83 = vmatpush1.bf16.msra.mxu0 0
    %84 = vmatprep.subr.bf16.mxu0 0
    %85 = vmatpush1.bf16.msra.mxu0 0
    %86 = vmatprep.subr.bf16.mxu0 0
    %87 = vmatpush1.bf16.msra.mxu0 0
    %88 = vmatprep.subr.bf16.mxu0 0
    %89 = vmatpush1.bf16.msra.mxu0 0
    %90 = vmatprep.mubr.bf16.mxu0 0
    %91 = vmatmul.mubr.bf16.gmra.mrb[0].mxu0 %v25
    %v92 = vpop.f32.mrb[0].mxu0
    %v93 = vadd.f32 %v56, %v92
    %v94 = vpop.f32.mrb[0].mxu0
    %v95 = vpop.f32.mrb[0].mxu0
    %v96 = vadd.f32 %v56, %v95
    %v97 = vpop.f32.mrb[0].mxu0
    %98 = vmatprep.mubr.bf16.mxu0 0
    %99 = vmatmul.mubr.bf16.gmra.mrb[0].mxu0 %v26
    %v100 = vpop.f32.mrb[0].mxu0
    %v101 = vadd.f32 %v56, %v100
    %v102 = vpop.f32.mrb[0].mxu0
    %v103 = vpop.f32.mrb[0].mxu0
    %v104 = vpop.f32.mrb[0].mxu0
    %105 = vdwg.mxu0
    %v106 = vmax.f32 %v93, 0.0
    %v107 = vmax.f32 %v96, 0.0
    %v108 = vmax.f32 %v101, 0.0
    %v109 = vpack.c.bf16 %v107, %v106
    %v110 = vpack.c.bf16 %v108, %v108
    %v111 = vld [vmem:[%s3] sm:$0xff]
    %v112 = vld [vmem:[%s3 + $0x8] sm:$0xff]
    %v113 = vld [vmem:[%s3 + $0x10] sm:$0xff]
    %v114 = vld [vmem:[%s3 + $0x18] sm:$0xff]
    %v115 = vpack.c.bf16 %v112, %v111
    %v116 = vpack.c.bf16 %v114, %v113
    %v117 = vld [vmem:[%s4] sm:$0x1]
    %v119 = vlaneseq
    %v120 = vshrl.u32 %v119, 7
    %v121 = vsub.s32 0, %v120
    %v122 = vrot.slane %v117, %v121
    %vm124 = vcmask 261120
    %v126 = vsel %vm124, %v109, 0
    %v129 = vsel %vm124, %v110, 0
    %131 = vmatprep.subr.bf16.mxu0 0
    %132 = vmatpush1.bf16.msra.mxu0 %v115
    %133 = vmatprep.subr.bf16.mxu0 0
    %134 = vmatpush1.bf16.msra.mxu0 %v116
    %135 = vmatprep.subr.bf16.mxu0 0
    %136 = vmatpush1.bf16.msra.mxu0 0
    %137 = vmatprep.subr.bf16.mxu0 0
    %138 = vmatpush1.bf16.msra.mxu0 0
    %139 = vmatprep.subr.bf16.mxu0 0
    %140 = vmatpush1.bf16.msra.mxu0 0
    %141 = vmatprep.subr.bf16.mxu0 0
    %142 = vmatpush1.bf16.msra.mxu0 0
    %143 = vmatprep.subr.bf16.mxu0 0
    %144 = vmatpush1.bf16.msra.mxu0 0
    %145 = vmatprep.subr.bf16.mxu0 0
    %146 = vmatpush1.bf16.msra.mxu0 0
    %147 = vmatprep.subr.bf16.mxu0 0
    %148 = vmatpush1.bf16.msra.mxu0 0
    %149 = vmatprep.subr.bf16.mxu0 0
    %150 = vmatpush1.bf16.msra.mxu0 0
    %151 = vmatprep.subr.bf16.mxu0 0
    %152 = vmatpush1.bf16.msra.mxu0 0
    %153 = vmatprep.subr.bf16.mxu0 0
    %154 = vmatpush1.bf16.msra.mxu0 0
    %155 = vmatprep.subr.bf16.mxu0 0
    %156 = vmatpush1.bf16.msra.mxu0 0
    %157 = vmatprep.subr.bf16.mxu0 0
    %158 = vmatpush1.bf16.msra.mxu0 0
    %159 = vmatprep.subr.bf16.mxu0 0
    %160 = vmatpush1.bf16.msra.mxu0 0
    %161 = vmatprep.subr.bf16.mxu0 0
    %162 = vmatpush1.bf16.msra.mxu0 0
    %163 = vmatprep.mubr.bf16.mxu0 0
    %164 = vmatmul.mubr.bf16.gmra.mrb[0].mxu0 %v126
    %v165 = vpop.f32.mrb[0].mxu0
    %v166 = vadd.f32 %v122, %v165
    %v167 = vpop.f32.mrb[0].mxu0
    %v168 = vpop.f32.mrb[0].mxu0
    %v169 = vadd.f32 %v122, %v168
    %v170 = vpop.f32.mrb[0].mxu0
    %171 = vmatprep.mubr.bf16.mxu0 0
    %172 = vmatmul.mubr.bf16.gmra.mrb[0].mxu0 %v129
    %v173 = vpop.f32.mrb[0].mxu0
    %v174 = vadd.f32 %v122, %v173
    %v175 = vpop.f32.mrb[0].mxu0
    %v176 = vpop.f32.mrb[0].mxu0
    %v177 = vpop.f32.mrb[0].mxu0
    %178 = vdwg.mxu0
    %179 = vst.msk [vmem:[#allocation2] sm:$0xff] %vm124, %v166
    %180 = vst.msk [vmem:[#allocation2 + $0x8] sm:$0xff] %vm124, %v169
    %181 = vst.msk [vmem:[#allocation2 + $0x10] sm:$0xff] %vm124, %v174
    // Predicated region
    $region22: #{tpu_custom_call.1} parent=1 // pred_check
      _
    $region23: #{tpu_custom_call.1} parent=1 // pred_check_branch
      %183 = sbr.rel (0) target = $region25
    $region24: #{tpu_custom_call.1} parent=1 // pred_region
      %s185 = ssub.s32 384, 384
      %186 = vsyncadd [#allocation3], %s185
      %s187 = sshll.u32 [#allocation2], 4
      %s188 = int_to_ptr.vmem [resolvable:$true] %s187
      %193 = dma.vmem_to_hbm [thread:$0]  %s188, 384, %s5, [#allocation3], 128, 128, 8
    $region25: #{tpu_custom_call.1} parent=1 // pred_fallthru
      _
    // Predicated region
    $region26: #{tpu_custom_call.1} parent=1 // pred_check
      _
    $region27: #{tpu_custom_call.1} parent=1 // pred_check_branch
      %195 = sbr.rel (0) target = $region29
    $region28: #{tpu_custom_call.1} parent=1 // pred_region
      %196 = dma.done [#allocation3], 384
    $region29: #{tpu_custom_call.1} parent=1 // pred_fallthru
      _
    %197 = vsyncpa [#allocation3], 1

</llo_original>
